<compile_context>
chip_gen: v7x
topology: tpu7x:2x2x1
jax: 0.10.0
libtpu: 0.0.40
codegen_flags: <defaults>
</compile_context>

<pallas_src>
import math

import jax
import jax.numpy as jnp
from jax.experimental import pallas as pl
from jax.experimental.pallas import tpu as pltpu


LANES = 128                      # vreg lane width (last dim)
_TARGET_BLOCK_BYTES = 2 << 20    # ~2 MiB per buffer; 4 buffers (in/out, double-
                                 # buffered) -> ~8 MiB VMEM, safe on every gen.


def _copy_kernel(x_ref, o_ref):
    # Elementwise identity copy of one (BLOCK_ROWS, 128) tile.
    o_ref[...] = x_ref[...]


def _flatten_shape(shape, start_dim, end_dim):
    """Replicates torch.flatten output-shape semantics (negative dims allowed)."""
    n = len(shape)
    s = start_dim % n
    e = end_dim % n
    collapsed = 1
    for d in shape[s:e + 1]:
        collapsed *= d
    return tuple(shape[:s]) + (collapsed,) + tuple(shape[e + 1:])


def _sublane_pack(dtype):
    """Minimal sublane packing: 8 rows f32, 16 rows bf16, 32 rows int8/fp8."""
    itemsize = jnp.dtype(dtype).itemsize
    return 8 * max(1, 4 // itemsize)


def _round_up(a, b):
    return ((a + b - 1) // b) * b


def _copy_2d(view):
    """Tiled Pallas copy of a (rows, 128) buffer with multi-MiB blocks."""
    rows, lanes = view.shape
    dtype = view.dtype
    itemsize = jnp.dtype(dtype).itemsize
    pack = _sublane_pack(dtype)

    # Dtype-aware block rows: ~2 MiB per buffer, multiple of the sublane packing,
    # never larger than the (packing-rounded) number of rows.
    block_rows = max(pack, (_TARGET_BLOCK_BYTES // (lanes * itemsize)) // pack * pack)
    block_rows = min(block_rows, _round_up(rows, pack))
    grid = (pl.cdiv(rows, block_rows),)

    return pl.pallas_call(
        _copy_kernel,
        out_shape=jax.ShapeDtypeStruct((rows, lanes), dtype),
        grid=grid,
        in_specs=[pl.BlockSpec((block_rows, lanes), lambda i: (i, 0))],
        out_specs=pl.BlockSpec((block_rows, lanes), lambda i: (i, 0)),
        compiler_params=pltpu.CompilerParams(
            dimension_semantics=("parallel",)),          # 2x on v7x (2 TCs/chip)
        cost_estimate=pl.CostEstimate(
            flops=0, transcendentals=0,
            bytes_accessed=2 * rows * lanes * itemsize),  # pure mem-bound copy
    )(view)


def flatten_pallas(x, start_dim=0, end_dim=-1):
    out_shape = _flatten_shape(x.shape, start_dim, end_dim)
    total = math.prod(x.shape) if x.shape else 1

    if total == 0:
        # Degenerate empty tensor: metadata-only reshape.
        return jnp.reshape(x, out_shape)

    if total % LANES == 0:
        # Fast path: lane-aligned slab, copy directly.
        rows = total // LANES
        y2d = _copy_2d(x.reshape(rows, LANES))
        return y2d.reshape(out_shape)

    # Ragged path: pad the flat buffer to a (pack*128)-aligned slab, copy it
    # through the same tiled kernel, trim the tail.  Never stages the whole
    # array in a single VMEM block (unlike the previous (1, total) fallback).
    pack = _sublane_pack(x.dtype)
    flat = x.reshape(total)
    padded = _round_up(total, LANES * pack)
    flat_p = jnp.pad(flat, (0, padded - total))
    y2d = _copy_2d(flat_p.reshape(padded // LANES, LANES))
    return y2d.reshape(padded)[:total].reshape(out_shape)


class Flatten:
    """JAX/Pallas equivalent of neuralnet_pytorch Flatten (no parameters)."""

    def __init__(self, start_dim=0, end_dim=-1, input_shape=None):
        self.start_dim = start_dim
        self.end_dim = end_dim
        self.input_shape = input_shape

    def __call__(self, x):
        return flatten_pallas(x, self.start_dim, self.end_dim)


if __name__ == "__main__":
    key = jax.random.PRNGKey(0)
    x = jax.random.normal(key, (2, 4, 16, 16), dtype=jnp.float32)  # NCHW

    # Default module: Flatten() -> flatten everything into 1D (like torch default).
    flat_all = Flatten()
    y_all = jax.block_until_ready(flat_all(x))
    ref_all = jnp.reshape(x, (-1,))
    assert y_all.shape == (2 * 4 * 16 * 16,), y_all.shape
    assert y_all.dtype == x.dtype
    assert bool(jnp.array_equal(y_all, ref_all))

    # Common case: Flatten(start_dim=1) -> (N, C*H*W)
    flat_feat = Flatten(start_dim=1, end_dim=-1)
    y_feat = jax.block_until_ready(flat_feat(x))
    ref_feat = jnp.reshape(x, (2, 4 * 16 * 16))
    assert y_feat.shape == (2, 1024), y_feat.shape
    assert bool(jnp.array_equal(y_feat, ref_feat))

    # Middle-dims case: Flatten(start_dim=1, end_dim=2) -> (N, C*H, W)
    flat_mid = Flatten(start_dim=1, end_dim=2)
    y_mid = jax.block_until_ready(flat_mid(x))
    ref_mid = jnp.reshape(x, (2, 4 * 16, 16))
    assert y_mid.shape == (2, 64, 16), y_mid.shape
    assert bool(jnp.array_equal(y_mid, ref_mid))

    # Ragged case (total not a multiple of 128) exercises the padded path.
    key2 = jax.random.PRNGKey(0)
    x_rag = jax.random.normal(key2, (3, 5, 7), dtype=jnp.float32)
    y_rag = jax.block_until_ready(Flatten()(x_rag))
    assert y_rag.shape == (105,), y_rag.shape
    assert bool(jnp.array_equal(y_rag, jnp.reshape(x_rag, (-1,))))

    # bf16 case exercises dtype-aware (16,128) sublane packing.
    x_bf = jax.random.normal(key, (2, 4, 16, 16), dtype=jnp.float32).astype(jnp.bfloat16)
    y_bf = jax.block_until_ready(Flatten(start_dim=1)(x_bf))
    assert y_bf.shape == (2, 1024), y_bf.shape
    assert y_bf.dtype == jnp.bfloat16
    assert bool(jnp.array_equal(y_bf, jnp.reshape(x_bf, (2, 1024))))

    print("KERNEL_OK")
</pallas_src>

<mosaic_0001>
module attributes {stable_mosaic.version = 11 : i64} {
  func.func @_copy_kernel(%arg0: i32, %arg1: memref<16x128xf32, #tpu.memory_space<vmem>>, %arg2: memref<16x128xf32, #tpu.memory_space<vmem>>) attributes {dimension_semantics = [#tpu.dimension_semantics<parallel>], iteration_bounds = array<i64: 1>, scalar_prefetch = 0 : i64, scratch_operands = 0 : i64, tpu.core_type = #tpu.core_type<tc>, window_params = [{transform_indices = @transform_0, window_bounds = array<i64: 16, 128>}, {transform_indices = @transform_1, window_bounds = array<i64: 16, 128>}]} {
    %c0 = arith.constant 0 : index
    %c0_0 = arith.constant 0 : index
    %0 = vector.load %arg1[%c0, %c0_0] : memref<16x128xf32, #tpu.memory_space<vmem>>, vector<16x128xf32>
    %c0_1 = arith.constant 0 : index
    %c0_2 = arith.constant 0 : index
    %1 = vector.load %arg2[%c0_1, %c0_2] : memref<16x128xf32, #tpu.memory_space<vmem>>, vector<16x128xf32>
    tpu.vector_store %arg2[%c0_1, %c0_2], %0 {strides = array<i32>} : memref<16x128xf32, #tpu.memory_space<vmem>>, vector<16x128xf32>,
    return
  }
  func.func @transform_0(%arg0: i32) -> (i32, i32) {
    %c0_i32 = arith.constant 0 : i32
    %c0_i32_0 = arith.constant 0 : i32
    return %arg0, %c0_i32 : i32, i32
  }
  func.func @transform_1(%arg0: i32) -> (i32, i32) {
    %c0_i32 = arith.constant 0 : i32
    %c0_i32_0 = arith.constant 0 : i32
    return %arg0, %c0_i32 : i32, i32
  }
}

</mosaic_0001>

<llo_original>
// kernel: tpu_custom_call.1
$region0: #{tpu_custom_call.1}
  #allocation0 [shape = 'u32[]', space=smem, size = 0x4, offset = 0x4, fixed_abs, tag = 'smem constant byte address 0x4 - core index']
  #allocation1 [shape = 'u32[144,128]{1,0:T(1,128)}', space=vmem, size = 0x12000, scoped, tag = 'internal scratch']
  %s0 = inlined_call_operand.hbm [shape: f32[16,128], index: 0, kind: input, shape index: {}]
  %s1 = inlined_call_operand.hbm [shape: f32[16,128], index: 1, kind: output, shape index: {}]
  %s2 = sld [smem:[#allocation0]]
  $region18: #{tpu_custom_call.1} parent=0
    _
  %s4 = ssub.s32 1, %s2
  %s5 = scalar_select 0, %s4, %s2
  $region1: #{tpu_custom_call.1} parent=0
    #allocation2 [shape = 'u8[8192]{0}', space=vmem, size = 0x2000, scoped, tag = 'input window, operand 0, single buffered']
    #allocation3 [shape = 's32[1]{0}', space=sflag, size = 0x4, scoped, tag = 'scoped memory for tpu_custom_call.1']
    #allocation4 [shape = 's32[1]{0}', space=sflag, size = 0x4, scoped, tag = 'scoped memory for tpu_custom_call.1']
    #allocation5 [shape = 'u8[8192]{0}', space=vmem, size = 0x2000, scoped, tag = 'output window, operand 0, single buffered']
    %6 = vsyncpa [#allocation3], 0
    %7 = vsyncpa [#allocation4], 0
    // Predicated region
    $region2: #{tpu_custom_call.1} parent=1 // pred_check
      _
    $region3: #{tpu_custom_call.1} parent=1 // pred_check_branch
      %9 = sbr.rel (0) target = $region5
    $region4: #{tpu_custom_call.1} parent=1 // pred_region
      %s11 = ssub.s32 256, 256
      %12 = vsyncadd [#allocation3], %s11
      %s13 = sshll.u32 [#allocation2], 4
      %s14 = int_to_ptr.vmem [resolvable:$true] %s13
      %19 = dma.hbm_to_vmem [thread:$0]  %s0, 256, %s14, [#allocation3], 128, 128, 8
    $region5: #{tpu_custom_call.1} parent=1 // pred_fallthru
      _
    // Predicated region
    $region6: #{tpu_custom_call.1} parent=1 // pred_check
      _
    $region7: #{tpu_custom_call.1} parent=1 // pred_check_branch
      %21 = sbr.rel (0) target = $region9
    $region8: #{tpu_custom_call.1} parent=1 // pred_region
      %22 = dma.done [#allocation3], 256
    $region9: #{tpu_custom_call.1} parent=1 // pred_fallthru
      _
    %v23 = vld [vmem:[#allocation2] sm:$0xff]
    %v24 = vld [vmem:[#allocation2 + $0x8] sm:$0xff]
    %25 = vst [vmem:[#allocation5] sm:$0xff] %v23
    %26 = vst [vmem:[#allocation5 + $0x8] sm:$0xff] %v24
    // Predicated region
    $region10: #{tpu_custom_call.1} parent=1 // pred_check
      _
    $region11: #{tpu_custom_call.1} parent=1 // pred_check_branch
      %28 = sbr.rel (0) target = $region13
    $region12: #{tpu_custom_call.1} parent=1 // pred_region
      %s30 = ssub.s32 256, 256
      %31 = vsyncadd [#allocation4], %s30
      %s32 = sshll.u32 [#allocation5], 4
      %s33 = int_to_ptr.vmem [resolvable:$true] %s32
      %38 = dma.vmem_to_hbm [thread:$0]  %s33, 256, %s1, [#allocation4], 128, 128, 8
    $region13: #{tpu_custom_call.1} parent=1 // pred_fallthru
      _
    // Predicated region
    $region14: #{tpu_custom_call.1} parent=1 // pred_check
      _
    $region15: #{tpu_custom_call.1} parent=1 // pred_check_branch
      %40 = sbr.rel (0) target = $region17
    $region16: #{tpu_custom_call.1} parent=1 // pred_region
      %41 = dma.done [#allocation4], 256
    $region17: #{tpu_custom_call.1} parent=1 // pred_fallthru
      _
    %42 = vsyncpa [#allocation3], 1
    %43 = vsyncpa [#allocation4], 1

</llo_original>
